<compile_context>
chip_gen: v7x
topology: tpu7x:2x2x1
jax: 0.10.0
libtpu: 0.0.40
codegen_flags: <defaults>
</compile_context>

<pallas_src>
import functools
import math

import jax
import jax.numpy as jnp
from jax import lax
from jax.experimental import pallas as pl
from jax.experimental.pallas import tpu as pltpu


# Tables at or below this size take the VMEM-resident fast path.  The budget is
# conservative: 2x (input double-buffer) of this plus the PE/output tiles must
# stay under the tightest per-core VMEM (v7x: 64 MiB physical).
_VMEM_TABLE_BYTES_MAX = 16 * 1024 * 1024


def _make_sinusoidal_pe(max_seq_len: int, d_model: int) -> jnp.ndarray:
    """Cached PE exactly as espnet PositionalEncoding.extend_pe builds it."""
    position = jnp.arange(0, max_seq_len, dtype=jnp.float32)[:, None]          # (L, 1)
    div_term = jnp.exp(
        jnp.arange(0, d_model, 2, dtype=jnp.float32)
        * -(math.log(10000.0) / d_model)
    )                                                                           # (D/2,)
    theta = position * div_term                                                 # (L, D/2)
    pe = jnp.zeros((max_seq_len, d_model), dtype=jnp.float32)
    pe = pe.at[:, 0::2].set(jnp.sin(theta))
    pe = pe.at[:, 1::2].set(jnp.cos(theta))
    return pe                                                                   # (L, D)


def _embed_pe_vmem_kernel(ids_ref,      # SMEM, (B*T,) int32 token ids (scalar prefetch)
                          table_ref,    # VMEM, (V, D) f32 full embedding table
                          pe_ref,       # VMEM, (tile_t, D) f32 PE tile
                          out_ref,      # VMEM, (tile_t, D) f32 output tile (batch dim squeezed)
                          *, xscale, vocab, seq_len, tile_t):
    """Fast path: table is VMEM-resident; gather rows with dynamic VMEM loads."""
    t = pl.program_id(0)
    b = pl.program_id(1)
    base = b * seq_len + t * tile_t

    def gather_row(j, carry):
        tok = ids_ref[base + j]
        # nn.Embedding would raise on out-of-range ids; we clamp instead.
        tok = jnp.minimum(jnp.maximum(tok, 0), vocab - 1)
        out_ref[pl.ds(j, 1), :] = table_ref[pl.ds(tok, 1), :]
        return carry

    lax.fori_loop(0, tile_t, gather_row, 0, unroll=True)

    # y = emb * sqrt(d_model) + pe[t0 : t0 + tile_t]  (single vectorized VPU op)
    out_ref[...] = out_ref[...] * xscale + pe_ref[...]


def _embed_pe_hbm_kernel(ids_ref,       # SMEM, (B*T,) int32 token ids (scalar prefetch)
                         table_hbm,     # HBM (pl.ANY), (V, D) f32 embedding table
                         pe_ref,        # VMEM, (tile_t, D) f32 PE tile
                         out_ref,       # VMEM, (tile_t, D) f32 output tile
                         sem,           # single DMA semaphore
                         *, xscale, vocab, seq_len, tile_t):
    """Fallback for huge vocabularies: per-row HBM DMA gather, aggregate wait."""
    t = pl.program_id(0)
    b = pl.program_id(1)
    base = b * seq_len + t * tile_t

    # Issue one row-gather DMA per token, straight into the output block; all
    # copies signal the same semaphore.
    def issue_row(j, carry):
        tok = ids_ref[base + j]
        tok = jnp.minimum(jnp.maximum(tok, 0), vocab - 1)
        pltpu.make_async_copy(
            table_hbm.at[pl.ds(tok, 1), :],
            out_ref.at[pl.ds(j, 1), :],
            sem,
        ).start()
        return carry

    lax.fori_loop(0, tile_t, issue_row, 0, unroll=True)

    # One aggregate wait: the descriptor's byte count (tile_t * D * 4) equals
    # the sum of the tile_t issued (1, D) copies signaling `sem`.
    # Requires tile_t <= V (asserted in the wrapper) so the source slice is valid.
    pltpu.make_async_copy(
        table_hbm.at[pl.ds(0, tile_t), :],
        out_ref,
        sem,
    ).wait()

    out_ref[...] = out_ref[...] * xscale + pe_ref[...]


def embedding_forward(tokens, emb_table, pe_full, *, tile_t=None,
                      force_hbm_gather=False):
    """tokens: (B, T) int32; emb_table: (V, D) f32; pe_full: (L, D) f32 -> (B, T, D) f32."""
    B, T = tokens.shape
    V, D = emb_table.shape
    L = pe_full.shape[0]
    if T > L:
        # espnet's PositionalEncoding.extend_pe would grow the table; here the
        # cached PE is fixed at max_seq_len, so refuse instead of silently
        # feeding a short slice.
        raise ValueError(f"sequence length {T} exceeds cached PE length {L}")

    if tile_t is None:
        tile_t = T if T <= 256 else 256
    assert T % tile_t == 0, "T must be divisible by tile_t"
    assert tile_t % 8 == 0, "row tile must be a multiple of 8 (sublane tiling)"

    xscale = float(math.sqrt(D))
    emb_table = emb_table.astype(jnp.float32)
    pe_full = pe_full.astype(jnp.float32)
    ids_flat = tokens.reshape(B * T).astype(jnp.int32)   # compact 1-D SMEM layout

    table_bytes = V * D * 4
    use_vmem_table = (not force_hbm_gather) and (table_bytes <= _VMEM_TABLE_BYTES_MAX)

    # Grid: time tiles outer, batch inner -> PE block index (t, 0) stays
    # constant across the inner axis so its tile is not re-fetched per batch row.
    grid = (T // tile_t, B)
    pe_spec = pl.BlockSpec((tile_t, D), lambda t, b, ids: (t, 0))
    out_spec = pl.BlockSpec((None, tile_t, D), lambda t, b, ids: (b, t, 0))
    out_shape = jax.ShapeDtypeStruct((B, T, D), jnp.float32)

    if use_vmem_table:
        kernel = functools.partial(
            _embed_pe_vmem_kernel, xscale=xscale, vocab=V, seq_len=T, tile_t=tile_t)
        tile_bytes = tile_t * D * 4
        # Table may be double-buffered by the pipeline; PE/out tiles are too.
        vmem_needed = 2 * table_bytes + 4 * tile_bytes + (2 << 20)
        vmem_limit = int(min(48 * 1024 * 1024, max(32 * 1024 * 1024, vmem_needed)))
        return pl.pallas_call(
            kernel,
            out_shape=out_shape,
            grid_spec=pltpu.PrefetchScalarGridSpec(
                num_scalar_prefetch=1,                    # token ids -> SMEM
                grid=grid,
                in_specs=[
                    # Whole table as a VMEM block with a constant block index:
                    # DMA'd in once, then gathered with in-VMEM dynamic loads.
                    pl.BlockSpec((V, D), lambda t, b, ids: (0, 0)),
                    pe_spec,
                ],
                out_specs=out_spec,
            ),
            compiler_params=pltpu.CompilerParams(
                dimension_semantics=("parallel", "parallel"),
                vmem_limit_bytes=vmem_limit),
        )(ids_flat, emb_table, pe_full)

    # Huge-vocab fallback: table stays in HBM, rows are DMA-gathered per step.
    assert tile_t <= V, "aggregate-wait descriptor needs tile_t <= vocab"
    kernel = functools.partial(
        _embed_pe_hbm_kernel, xscale=xscale, vocab=V, seq_len=T, tile_t=tile_t)
    return pl.pallas_call(
        kernel,
        out_shape=out_shape,
        grid_spec=pltpu.PrefetchScalarGridSpec(
            num_scalar_prefetch=1,
            grid=grid,
            in_specs=[
                pl.BlockSpec(memory_space=pl.ANY),        # raw HBM table ref
                pe_spec,
            ],
            out_specs=out_spec,
            scratch_shapes=[pltpu.SemaphoreType.DMA(())],  # single shared DMA sem
        ),
        compiler_params=pltpu.CompilerParams(
            dimension_semantics=("parallel", "parallel")),
    )(ids_flat, emb_table, pe_full)


if __name__ == "__main__":
    # Small, deterministic problem consistent with the module:
    # nn.Embedding(vocab=64, d_model=128) followed by PositionalEncoding.
    # D=128 keeps the output lane-dense (multiple of the 128-lane vreg width).
    B, T, V, D = 2, 16, 64, 128
    MAX_SEQ_LEN = 512

    key = jax.random.PRNGKey(0)
    k_tok, k_emb = jax.random.split(key)
    tokens = jax.random.randint(k_tok, (B, T), minval=0, maxval=V, dtype=jnp.int32)
    emb_table = jax.random.normal(k_emb, (V, D), dtype=jnp.float32)
    pe_full = _make_sinusoidal_pe(MAX_SEQ_LEN, D)

    # Pure-JAX reference: embed lookup * sqrt(d_model) + pe[:, :T]
    ref = emb_table[tokens] * math.sqrt(D) + pe_full[None, :T, :]

    # VMEM-resident-table fast path (table fits comfortably in VMEM here).
    out = embedding_forward(tokens, emb_table, pe_full)
    out = jax.block_until_ready(out)
    assert out.shape == (B, T, D) and out.dtype == jnp.float32
    assert jnp.allclose(out, ref, atol=1e-5, rtol=1e-5), "VMEM path mismatch vs reference"

    # Also exercise the huge-vocab HBM row-gather fallback at the same shapes.
    out_hbm = embedding_forward(tokens, emb_table, pe_full, force_hbm_gather=True)
    out_hbm = jax.block_until_ready(out_hbm)
    assert jnp.allclose(out_hbm, ref, atol=1e-5, rtol=1e-5), "HBM path mismatch vs reference"

    # TODO(synk): padding_idx handling (zeroed rows) if the wrapped nn.Embedding
    # was constructed with one; dropout in the original PositionalEncoding is a
    # no-op at export/eval time and is not modeled.
    print("KERNEL_OK")
</pallas_src>

<mosaic_0001>
module attributes {stable_mosaic.version = 11 : i64} {
  func.func @_embed_pe_vmem_kernel(%arg0: i32, %arg1: i32, %arg2: memref<32xi32, #tpu.memory_space<smem>>, %arg3: memref<64x128xf32, #tpu.memory_space<vmem>>, %arg4: memref<16x128xf32, #tpu.memory_space<vmem>>, %arg5: memref<1x16x128xf32, #tpu.memory_space<vmem>>) attributes {dimension_semantics = [#tpu.dimension_semantics<parallel>, #tpu.dimension_semantics<parallel>], iteration_bounds = array<i64: 1, 2>, scalar_prefetch = 1 : i64, scratch_operands = 0 : i64, tpu.core_type = #tpu.core_type<tc>, window_params = [{pipeline_mode = #tpu.pipeline_mode<synchronous>, transform_indices = @transform_0, window_bounds = array<i64: 64, 128>}, {transform_indices = @transform_1, window_bounds = array<i64: 16, 128>}, {transform_indices = @transform_2, window_bounds = array<i64: 1, 16, 128>}]} {
    %c16_i32 = arith.constant 16 : i32
    %0 = arith.muli %arg1, %c16_i32 : i32
    %c16_i32_0 = arith.constant 16 : i32
    %1 = arith.muli %arg0, %c16_i32_0 : i32
    %2 = arith.addi %0, %1 : i32
    %c0_i32 = arith.constant 0 : i32
    %3 = arith.addi %2, %c0_i32 : i32
    %4 = arith.index_cast %3 : i32 to index
    %5 = memref.load %arg2[%4] : memref<32xi32, #tpu.memory_space<smem>>
    %c0_i32_1 = arith.constant 0 : i32
    %6 = arith.maxsi %5, %c0_i32_1 : i32
    %c63_i32 = arith.constant 63 : i32
    %7 = arith.minsi %6, %c63_i32 : i32
    %8 = arith.index_cast %7 : i32 to index
    %c0 = arith.constant 0 : index
    %9 = vector.load %arg3[%8, %c0] : memref<64x128xf32, #tpu.memory_space<vmem>>, vector<1x128xf32>
    %c0_2 = arith.constant 0 : index
    %10 = arith.index_cast %c0_i32 : i32 to index
    %c0_3 = arith.constant 0 : index
    %11 = vector.load %arg5[%c0_2, %10, %c0_3] : memref<1x16x128xf32, #tpu.memory_space<vmem>>, vector<1x1x128xf32>
    %12 = vector.shape_cast %11 : vector<1x1x128xf32> to vector<1x128xf32>
    %13 = vector.shape_cast %9 : vector<1x128xf32> to vector<1x1x128xf32>
    tpu.vector_store %arg5[%c0_2, %10, %c0_3], %13 {strides = array<i32>} : memref<1x16x128xf32, #tpu.memory_space<vmem>>, vector<1x1x128xf32>,
    %c1_i32 = arith.constant 1 : i32
    %14 = arith.addi %2, %c1_i32 : i32
    %15 = arith.index_cast %14 : i32 to index
    %16 = memref.load %arg2[%15] : memref<32xi32, #tpu.memory_space<smem>>
    %c0_i32_4 = arith.constant 0 : i32
    %17 = arith.maxsi %16, %c0_i32_4 : i32
    %c63_i32_5 = arith.constant 63 : i32
    %18 = arith.minsi %17, %c63_i32_5 : i32
    %19 = arith.index_cast %18 : i32 to index
    %c0_6 = arith.constant 0 : index
    %20 = vector.load %arg3[%19, %c0_6] : memref<64x128xf32, #tpu.memory_space<vmem>>, vector<1x128xf32>
    %c0_7 = arith.constant 0 : index
    %21 = arith.index_cast %c1_i32 : i32 to index
    %c0_8 = arith.constant 0 : index
    %22 = vector.load %arg5[%c0_7, %21, %c0_8] : memref<1x16x128xf32, #tpu.memory_space<vmem>>, vector<1x1x128xf32>
    %23 = vector.shape_cast %22 : vector<1x1x128xf32> to vector<1x128xf32>
    %24 = vector.shape_cast %20 : vector<1x128xf32> to vector<1x1x128xf32>
    tpu.vector_store %arg5[%c0_7, %21, %c0_8], %24 {strides = array<i32>} : memref<1x16x128xf32, #tpu.memory_space<vmem>>, vector<1x1x128xf32>,
    %c2_i32 = arith.constant 2 : i32
    %25 = arith.addi %2, %c2_i32 : i32
    %26 = arith.index_cast %25 : i32 to index
    %27 = memref.load %arg2[%26] : memref<32xi32, #tpu.memory_space<smem>>
    %c0_i32_9 = arith.constant 0 : i32
    %28 = arith.maxsi %27, %c0_i32_9 : i32
    %c63_i32_10 = arith.constant 63 : i32
    %29 = arith.minsi %28, %c63_i32_10 : i32
    %30 = arith.index_cast %29 : i32 to index
    %c0_11 = arith.constant 0 : index
    %31 = vector.load %arg3[%30, %c0_11] : memref<64x128xf32, #tpu.memory_space<vmem>>, vector<1x128xf32>
    %c0_12 = arith.constant 0 : index
    %32 = arith.index_cast %c2_i32 : i32 to index
    %c0_13 = arith.constant 0 : index
    %33 = vector.load %arg5[%c0_12, %32, %c0_13] : memref<1x16x128xf32, #tpu.memory_space<vmem>>, vector<1x1x128xf32>
    %34 = vector.shape_cast %33 : vector<1x1x128xf32> to vector<1x128xf32>
    %35 = vector.shape_cast %31 : vector<1x128xf32> to vector<1x1x128xf32>
    tpu.vector_store %arg5[%c0_12, %32, %c0_13], %35 {strides = array<i32>} : memref<1x16x128xf32, #tpu.memory_space<vmem>>, vector<1x1x128xf32>,
    %c3_i32 = arith.constant 3 : i32
    %36 = arith.addi %2, %c3_i32 : i32
    %37 = arith.index_cast %36 : i32 to index
    %38 = memref.load %arg2[%37] : memref<32xi32, #tpu.memory_space<smem>>
    %c0_i32_14 = arith.constant 0 : i32
    %39 = arith.maxsi %38, %c0_i32_14 : i32
    %c63_i32_15 = arith.constant 63 : i32
    %40 = arith.minsi %39, %c63_i32_15 : i32
    %41 = arith.index_cast %40 : i32 to index
    %c0_16 = arith.constant 0 : index
    %42 = vector.load %arg3[%41, %c0_16] : memref<64x128xf32, #tpu.memory_space<vmem>>, vector<1x128xf32>
    %c0_17 = arith.constant 0 : index
    %43 = arith.index_cast %c3_i32 : i32 to index
    %c0_18 = arith.constant 0 : index
    %44 = vector.load %arg5[%c0_17, %43, %c0_18] : memref<1x16x128xf32, #tpu.memory_space<vmem>>, vector<1x1x128xf32>
    %45 = vector.shape_cast %44 : vector<1x1x128xf32> to vector<1x128xf32>
    %46 = vector.shape_cast %42 : vector<1x128xf32> to vector<1x1x128xf32>
    tpu.vector_store %arg5[%c0_17, %43, %c0_18], %46 {strides = array<i32>} : memref<1x16x128xf32, #tpu.memory_space<vmem>>, vector<1x1x128xf32>,
    %c4_i32 = arith.constant 4 : i32
    %47 = arith.addi %2, %c4_i32 : i32
    %48 = arith.index_cast %47 : i32 to index
    %49 = memref.load %arg2[%48] : memref<32xi32, #tpu.memory_space<smem>>
    %c0_i32_19 = arith.constant 0 : i32
    %50 = arith.maxsi %49, %c0_i32_19 : i32
    %c63_i32_20 = arith.constant 63 : i32
    %51 = arith.minsi %50, %c63_i32_20 : i32
    %52 = arith.index_cast %51 : i32 to index
    %c0_21 = arith.constant 0 : index
    %53 = vector.load %arg3[%52, %c0_21] : memref<64x128xf32, #tpu.memory_space<vmem>>, vector<1x128xf32>
    %c0_22 = arith.constant 0 : index
    %54 = arith.index_cast %c4_i32 : i32 to index
    %c0_23 = arith.constant 0 : index
    %55 = vector.load %arg5[%c0_22, %54, %c0_23] : memref<1x16x128xf32, #tpu.memory_space<vmem>>, vector<1x1x128xf32>
    %56 = vector.shape_cast %55 : vector<1x1x128xf32> to vector<1x128xf32>
    %57 = vector.shape_cast %53 : vector<1x128xf32> to vector<1x1x128xf32>
    tpu.vector_store %arg5[%c0_22, %54, %c0_23], %57 {strides = array<i32>} : memref<1x16x128xf32, #tpu.memory_space<vmem>>, vector<1x1x128xf32>,
    %c5_i32 = arith.constant 5 : i32
    %58 = arith.addi %2, %c5_i32 : i32
    %59 = arith.index_cast %58 : i32 to index
    %60 = memref.load %arg2[%59] : memref<32xi32, #tpu.memory_space<smem>>
    %c0_i32_24 = arith.constant 0 : i32
    %61 = arith.maxsi %60, %c0_i32_24 : i32
    %c63_i32_25 = arith.constant 63 : i32
    %62 = arith.minsi %61, %c63_i32_25 : i32
    %63 = arith.index_cast %62 : i32 to index
    %c0_26 = arith.constant 0 : index
    %64 = vector.load %arg3[%63, %c0_26] : memref<64x128xf32, #tpu.memory_space<vmem>>, vector<1x128xf32>
    %c0_27 = arith.constant 0 : index
    %65 = arith.index_cast %c5_i32 : i32 to index
    %c0_28 = arith.constant 0 : index
    %66 = vector.load %arg5[%c0_27, %65, %c0_28] : memref<1x16x128xf32, #tpu.memory_space<vmem>>, vector<1x1x128xf32>
    %67 = vector.shape_cast %66 : vector<1x1x128xf32> to vector<1x128xf32>
    %68 = vector.shape_cast %64 : vector<1x128xf32> to vector<1x1x128xf32>
    tpu.vector_store %arg5[%c0_27, %65, %c0_28], %68 {strides = array<i32>} : memref<1x16x128xf32, #tpu.memory_space<vmem>>, vector<1x1x128xf32>,
    %c6_i32 = arith.constant 6 : i32
    %69 = arith.addi %2, %c6_i32 : i32
    %70 = arith.index_cast %69 : i32 to index
    %71 = memref.load %arg2[%70] : memref<32xi32, #tpu.memory_space<smem>>
    %c0_i32_29 = arith.constant 0 : i32
    %72 = arith.maxsi %71, %c0_i32_29 : i32
    %c63_i32_30 = arith.constant 63 : i32
    %73 = arith.minsi %72, %c63_i32_30 : i32
    %74 = arith.index_cast %73 : i32 to index
    %c0_31 = arith.constant 0 : index
    %75 = vector.load %arg3[%74, %c0_31] : memref<64x128xf32, #tpu.memory_space<vmem>>, vector<1x128xf32>
    %c0_32 = arith.constant 0 : index
    %76 = arith.index_cast %c6_i32 : i32 to index
    %c0_33 = arith.constant 0 : index
    %77 = vector.load %arg5[%c0_32, %76, %c0_33] : memref<1x16x128xf32, #tpu.memory_space<vmem>>, vector<1x1x128xf32>
    %78 = vector.shape_cast %77 : vector<1x1x128xf32> to vector<1x128xf32>
    %79 = vector.shape_cast %75 : vector<1x128xf32> to vector<1x1x128xf32>
    tpu.vector_store %arg5[%c0_32, %76, %c0_33], %79 {strides = array<i32>} : memref<1x16x128xf32, #tpu.memory_space<vmem>>, vector<1x1x128xf32>,
    %c7_i32 = arith.constant 7 : i32
    %80 = arith.addi %2, %c7_i32 : i32
    %81 = arith.index_cast %80 : i32 to index
    %82 = memref.load %arg2[%81] : memref<32xi32, #tpu.memory_space<smem>>
    %c0_i32_34 = arith.constant 0 : i32
    %83 = arith.maxsi %82, %c0_i32_34 : i32
    %c63_i32_35 = arith.constant 63 : i32
    %84 = arith.minsi %83, %c63_i32_35 : i32
    %85 = arith.index_cast %84 : i32 to index
    %c0_36 = arith.constant 0 : index
    %86 = vector.load %arg3[%85, %c0_36] : memref<64x128xf32, #tpu.memory_space<vmem>>, vector<1x128xf32>
    %c0_37 = arith.constant 0 : index
    %87 = arith.index_cast %c7_i32 : i32 to index
    %c0_38 = arith.constant 0 : index
    %88 = vector.load %arg5[%c0_37, %87, %c0_38] : memref<1x16x128xf32, #tpu.memory_space<vmem>>, vector<1x1x128xf32>
    %89 = vector.shape_cast %88 : vector<1x1x128xf32> to vector<1x128xf32>
    %90 = vector.shape_cast %86 : vector<1x128xf32> to vector<1x1x128xf32>
    tpu.vector_store %arg5[%c0_37, %87, %c0_38], %90 {strides = array<i32>} : memref<1x16x128xf32, #tpu.memory_space<vmem>>, vector<1x1x128xf32>,
    %c8_i32 = arith.constant 8 : i32
    %91 = arith.addi %2, %c8_i32 : i32
    %92 = arith.index_cast %91 : i32 to index
    %93 = memref.load %arg2[%92] : memref<32xi32, #tpu.memory_space<smem>>
    %c0_i32_39 = arith.constant 0 : i32
    %94 = arith.maxsi %93, %c0_i32_39 : i32
    %c63_i32_40 = arith.constant 63 : i32
    %95 = arith.minsi %94, %c63_i32_40 : i32
    %96 = arith.index_cast %95 : i32 to index
    %c0_41 = arith.constant 0 : index
    %97 = vector.load %arg3[%96, %c0_41] : memref<64x128xf32, #tpu.memory_space<vmem>>, vector<1x128xf32>
    %c0_42 = arith.constant 0 : index
    %98 = arith.index_cast %c8_i32 : i32 to index
    %c0_43 = arith.constant 0 : index
    %99 = vector.load %arg5[%c0_42, %98, %c0_43] : memref<1x16x128xf32, #tpu.memory_space<vmem>>, vector<1x1x128xf32>
    %100 = vector.shape_cast %99 : vector<1x1x128xf32> to vector<1x128xf32>
    %101 = vector.shape_cast %97 : vector<1x128xf32> to vector<1x1x128xf32>
    tpu.vector_store %arg5[%c0_42, %98, %c0_43], %101 {strides = array<i32>} : memref<1x16x128xf32, #tpu.memory_space<vmem>>, vector<1x1x128xf32>,
    %c9_i32 = arith.constant 9 : i32
    %102 = arith.addi %2, %c9_i32 : i32
    %103 = arith.index_cast %102 : i32 to index
    %104 = memref.load %arg2[%103] : memref<32xi32, #tpu.memory_space<smem>>
    %c0_i32_44 = arith.constant 0 : i32
    %105 = arith.maxsi %104, %c0_i32_44 : i32
    %c63_i32_45 = arith.constant 63 : i32
    %106 = arith.minsi %105, %c63_i32_45 : i32
    %107 = arith.index_cast %106 : i32 to index
    %c0_46 = arith.constant 0 : index
    %108 = vector.load %arg3[%107, %c0_46] : memref<64x128xf32, #tpu.memory_space<vmem>>, vector<1x128xf32>
    %c0_47 = arith.constant 0 : index
    %109 = arith.index_cast %c9_i32 : i32 to index
    %c0_48 = arith.constant 0 : index
    %110 = vector.load %arg5[%c0_47, %109, %c0_48] : memref<1x16x128xf32, #tpu.memory_space<vmem>>, vector<1x1x128xf32>
    %111 = vector.shape_cast %110 : vector<1x1x128xf32> to vector<1x128xf32>
    %112 = vector.shape_cast %108 : vector<1x128xf32> to vector<1x1x128xf32>
    tpu.vector_store %arg5[%c0_47, %109, %c0_48], %112 {strides = array<i32>} : memref<1x16x128xf32, #tpu.memory_space<vmem>>, vector<1x1x128xf32>,
    %c10_i32 = arith.constant 10 : i32
    %113 = arith.addi %2, %c10_i32 : i32
    %114 = arith.index_cast %113 : i32 to index
    %115 = memref.load %arg2[%114] : memref<32xi32, #tpu.memory_space<smem>>
    %c0_i32_49 = arith.constant 0 : i32
    %116 = arith.maxsi %115, %c0_i32_49 : i32
    %c63_i32_50 = arith.constant 63 : i32
    %117 = arith.minsi %116, %c63_i32_50 : i32
    %118 = arith.index_cast %117 : i32 to index
    %c0_51 = arith.constant 0 : index
    %119 = vector.load %arg3[%118, %c0_51] : memref<64x128xf32, #tpu.memory_space<vmem>>, vector<1x128xf32>
    %c0_52 = arith.constant 0 : index
    %120 = arith.index_cast %c10_i32 : i32 to index
    %c0_53 = arith.constant 0 : index
    %121 = vector.load %arg5[%c0_52, %120, %c0_53] : memref<1x16x128xf32, #tpu.memory_space<vmem>>, vector<1x1x128xf32>
    %122 = vector.shape_cast %121 : vector<1x1x128xf32> to vector<1x128xf32>
    %123 = vector.shape_cast %119 : vector<1x128xf32> to vector<1x1x128xf32>
    tpu.vector_store %arg5[%c0_52, %120, %c0_53], %123 {strides = array<i32>} : memref<1x16x128xf32, #tpu.memory_space<vmem>>, vector<1x1x128xf32>,
    %c11_i32 = arith.constant 11 : i32
    %124 = arith.addi %2, %c11_i32 : i32
    %125 = arith.index_cast %124 : i32 to index
    %126 = memref.load %arg2[%125] : memref<32xi32, #tpu.memory_space<smem>>
    %c0_i32_54 = arith.constant 0 : i32
    %127 = arith.maxsi %126, %c0_i32_54 : i32
    %c63_i32_55 = arith.constant 63 : i32
    %128 = arith.minsi %127, %c63_i32_55 : i32
    %129 = arith.index_cast %128 : i32 to index
    %c0_56 = arith.constant 0 : index
    %130 = vector.load %arg3[%129, %c0_56] : memref<64x128xf32, #tpu.memory_space<vmem>>, vector<1x128xf32>
    %c0_57 = arith.constant 0 : index
    %131 = arith.index_cast %c11_i32 : i32 to index
    %c0_58 = arith.constant 0 : index
    %132 = vector.load %arg5[%c0_57, %131, %c0_58] : memref<1x16x128xf32, #tpu.memory_space<vmem>>, vector<1x1x128xf32>
    %133 = vector.shape_cast %132 : vector<1x1x128xf32> to vector<1x128xf32>
    %134 = vector.shape_cast %130 : vector<1x128xf32> to vector<1x1x128xf32>
    tpu.vector_store %arg5[%c0_57, %131, %c0_58], %134 {strides = array<i32>} : memref<1x16x128xf32, #tpu.memory_space<vmem>>, vector<1x1x128xf32>,
    %c12_i32 = arith.constant 12 : i32
    %135 = arith.addi %2, %c12_i32 : i32
    %136 = arith.index_cast %135 : i32 to index
    %137 = memref.load %arg2[%136] : memref<32xi32, #tpu.memory_space<smem>>
    %c0_i32_59 = arith.constant 0 : i32
    %138 = arith.maxsi %137, %c0_i32_59 : i32
    %c63_i32_60 = arith.constant 63 : i32
    %139 = arith.minsi %138, %c63_i32_60 : i32
    %140 = arith.index_cast %139 : i32 to index
    %c0_61 = arith.constant 0 : index
    %141 = vector.load %arg3[%140, %c0_61] : memref<64x128xf32, #tpu.memory_space<vmem>>, vector<1x128xf32>
    %c0_62 = arith.constant 0 : index
    %142 = arith.index_cast %c12_i32 : i32 to index
    %c0_63 = arith.constant 0 : index
    %143 = vector.load %arg5[%c0_62, %142, %c0_63] : memref<1x16x128xf32, #tpu.memory_space<vmem>>, vector<1x1x128xf32>
    %144 = vector.shape_cast %143 : vector<1x1x128xf32> to vector<1x128xf32>
    %145 = vector.shape_cast %141 : vector<1x128xf32> to vector<1x1x128xf32>
    tpu.vector_store %arg5[%c0_62, %142, %c0_63], %145 {strides = array<i32>} : memref<1x16x128xf32, #tpu.memory_space<vmem>>, vector<1x1x128xf32>,
    %c13_i32 = arith.constant 13 : i32
    %146 = arith.addi %2, %c13_i32 : i32
    %147 = arith.index_cast %146 : i32 to index
    %148 = memref.load %arg2[%147] : memref<32xi32, #tpu.memory_space<smem>>
    %c0_i32_64 = arith.constant 0 : i32
    %149 = arith.maxsi %148, %c0_i32_64 : i32
    %c63_i32_65 = arith.constant 63 : i32
    %150 = arith.minsi %149, %c63_i32_65 : i32
    %151 = arith.index_cast %150 : i32 to index
    %c0_66 = arith.constant 0 : index
    %152 = vector.load %arg3[%151, %c0_66] : memref<64x128xf32, #tpu.memory_space<vmem>>, vector<1x128xf32>
    %c0_67 = arith.constant 0 : index
    %153 = arith.index_cast %c13_i32 : i32 to index
    %c0_68 = arith.constant 0 : index
    %154 = vector.load %arg5[%c0_67, %153, %c0_68] : memref<1x16x128xf32, #tpu.memory_space<vmem>>, vector<1x1x128xf32>
    %155 = vector.shape_cast %154 : vector<1x1x128xf32> to vector<1x128xf32>
    %156 = vector.shape_cast %152 : vector<1x128xf32> to vector<1x1x128xf32>
    tpu.vector_store %arg5[%c0_67, %153, %c0_68], %156 {strides = array<i32>} : memref<1x16x128xf32, #tpu.memory_space<vmem>>, vector<1x1x128xf32>,
    %c14_i32 = arith.constant 14 : i32
    %157 = arith.addi %2, %c14_i32 : i32
    %158 = arith.index_cast %157 : i32 to index
    %159 = memref.load %arg2[%158] : memref<32xi32, #tpu.memory_space<smem>>
    %c0_i32_69 = arith.constant 0 : i32
    %160 = arith.maxsi %159, %c0_i32_69 : i32
    %c63_i32_70 = arith.constant 63 : i32
    %161 = arith.minsi %160, %c63_i32_70 : i32
    %162 = arith.index_cast %161 : i32 to index
    %c0_71 = arith.constant 0 : index
    %163 = vector.load %arg3[%162, %c0_71] : memref<64x128xf32, #tpu.memory_space<vmem>>, vector<1x128xf32>
    %c0_72 = arith.constant 0 : index
    %164 = arith.index_cast %c14_i32 : i32 to index
    %c0_73 = arith.constant 0 : index
    %165 = vector.load %arg5[%c0_72, %164, %c0_73] : memref<1x16x128xf32, #tpu.memory_space<vmem>>, vector<1x1x128xf32>
    %166 = vector.shape_cast %165 : vector<1x1x128xf32> to vector<1x128xf32>
    %167 = vector.shape_cast %163 : vector<1x128xf32> to vector<1x1x128xf32>
    tpu.vector_store %arg5[%c0_72, %164, %c0_73], %167 {strides = array<i32>} : memref<1x16x128xf32, #tpu.memory_space<vmem>>, vector<1x1x128xf32>,
    %c15_i32 = arith.constant 15 : i32
    %168 = arith.addi %2, %c15_i32 : i32
    %169 = arith.index_cast %168 : i32 to index
    %170 = memref.load %arg2[%169] : memref<32xi32, #tpu.memory_space<smem>>
    %c0_i32_74 = arith.constant 0 : i32
    %171 = arith.maxsi %170, %c0_i32_74 : i32
    %c63_i32_75 = arith.constant 63 : i32
    %172 = arith.minsi %171, %c63_i32_75 : i32
    %173 = arith.index_cast %172 : i32 to index
    %c0_76 = arith.constant 0 : index
    %174 = vector.load %arg3[%173, %c0_76] : memref<64x128xf32, #tpu.memory_space<vmem>>, vector<1x128xf32>
    %c0_77 = arith.constant 0 : index
    %175 = arith.index_cast %c15_i32 : i32 to index
    %c0_78 = arith.constant 0 : index
    %176 = vector.load %arg5[%c0_77, %175, %c0_78] : memref<1x16x128xf32, #tpu.memory_space<vmem>>, vector<1x1x128xf32>
    %177 = vector.shape_cast %176 : vector<1x1x128xf32> to vector<1x128xf32>
    %178 = vector.shape_cast %174 : vector<1x128xf32> to vector<1x1x128xf32>
    tpu.vector_store %arg5[%c0_77, %175, %c0_78], %178 {strides = array<i32>} : memref<1x16x128xf32, #tpu.memory_space<vmem>>, vector<1x1x128xf32>,
    %c16_i32_79 = arith.constant 16 : i32
    %c0_80 = arith.constant 0 : index
    %c0_81 = arith.constant 0 : index
    %c0_82 = arith.constant 0 : index
    %179 = vector.load %arg5[%c0_80, %c0_81, %c0_82] : memref<1x16x128xf32, #tpu.memory_space<vmem>>, vector<1x16x128xf32>
    %180 = vector.shape_cast %179 : vector<1x16x128xf32> to vector<16x128xf32>
    %cst = arith.constant 11.3137083 : f32
    %181 = vector.broadcast %cst : f32 to vector<16x128xf32>
    %182 = arith.mulf %180, %181 : vector<16x128xf32>
    %c0_83 = arith.constant 0 : index
    %c0_84 = arith.constant 0 : index
    %183 = vector.load %arg4[%c0_83, %c0_84] : memref<16x128xf32, #tpu.memory_space<vmem>>, vector<16x128xf32>
    %184 = arith.addf %182, %183 : vector<16x128xf32>
    %c0_85 = arith.constant 0 : index
    %c0_86 = arith.constant 0 : index
    %c0_87 = arith.constant 0 : index
    %185 = vector.load %arg5[%c0_85, %c0_86, %c0_87] : memref<1x16x128xf32, #tpu.memory_space<vmem>>, vector<1x16x128xf32>
    %186 = vector.shape_cast %185 : vector<1x16x128xf32> to vector<16x128xf32>
    %187 = vector.shape_cast %184 : vector<16x128xf32> to vector<1x16x128xf32>
    tpu.vector_store %arg5[%c0_85, %c0_86, %c0_87], %187 {strides = array<i32>} : memref<1x16x128xf32, #tpu.memory_space<vmem>>, vector<1x16x128xf32>,
    return
  }
  func.func @transform_0(%arg0: i32, %arg1: i32, %arg2: memref<32xi32, #tpu.memory_space<smem>>) -> (i32, i32) {
    %c0_i32 = arith.constant 0 : i32
    %c0_i32_0 = arith.constant 0 : i32
    %c0_i32_1 = arith.constant 0 : i32
    return %c0_i32, %c0_i32_0 : i32, i32
  }
  func.func @transform_1(%arg0: i32, %arg1: i32, %arg2: memref<32xi32, #tpu.memory_space<smem>>) -> (i32, i32) {
    %c0_i32 = arith.constant 0 : i32
    %c0_i32_0 = arith.constant 0 : i32
    return %arg0, %c0_i32 : i32, i32
  }
  func.func @transform_2(%arg0: i32, %arg1: i32, %arg2: memref<32xi32, #tpu.memory_space<smem>>) -> (i32, i32, i32) {
    %c0_i32 = arith.constant 0 : i32
    %c0_i32_0 = arith.constant 0 : i32
    return %arg1, %arg0, %c0_i32 : i32, i32, i32
  }
}

</mosaic_0001>

<llo_original>
// kernel: tpu_custom_call.1
$region0: #{tpu_custom_call.1}
  #allocation0 [shape = 'u32[]', space=smem, size = 0x4, offset = 0x4, fixed_abs, tag = 'smem constant byte address 0x4 - core index']
  #allocation1 [shape = 'u32[144,128]{1,0:T(1,128)}', space=vmem, size = 0x12000, scoped, tag = 'internal scratch']
  #allocation2 [shape = 's32[1]{0}', space=sflag, size = 0x4, scoped, tag = 'scoped memory for tpu_custom_call.1']
  #allocation3 [shape = 'u8[512]{0}', space=smem, size = 0x200, scoped, tag = 'prefetched SMEM operand 0']
  %s0 = inlined_call_operand.hbm [shape: s32[32], index: 0, kind: input, shape index: {}]
  %s1 = inlined_call_operand.hbm [shape: f32[64,128], index: 1, kind: input, shape index: {}]
  %s2 = inlined_call_operand.hbm [shape: f32[512,128], index: 2, kind: input, shape index: {}]
  %s3 = inlined_call_operand.hbm [shape: f32[2,16,128], index: 3, kind: output, shape index: {}]
  %s4 = sld [smem:[#allocation0]]
  $region49: #{tpu_custom_call.1} parent=0
    _
  %s6 = ssub.s32 1, %s4
  %s7 = scalar_select 0, %s6, %s4
  %9 = dma.hbm_to_smem %s0, 16, [#allocation3], [#allocation2]
  %10 = dma.done [#allocation2], 16
  %11 = sfence
  $region1: #{tpu_custom_call.1} parent=0
    #allocation4 [shape = 'u8[32768]{0}', space=vmem, size = 0x8000, scoped, tag = 'input window, operand 1, single buffered']
    #allocation5 [shape = 's32[2]{0}', space=sflag, size = 0x8, scoped, tag = 'scoped memory for tpu_custom_call.1']
    #allocation6 [shape = 's32[2]{0}', space=sflag, size = 0x8, scoped, tag = 'scoped memory for tpu_custom_call.1']
    #allocation7 [shape = 'u8[8192]{0}', space=vmem, size = 0x2000, scoped, tag = 'input window, operand 2, single buffered']
    #allocation8 [shape = 's32[1]{0}', space=sflag, size = 0x4, scoped, tag = 'scoped memory for tpu_custom_call.1']
    #allocation9 [shape = 'u8[16384]{0}', space=vmem, size = 0x4000, scoped, tag = 'output window, operand 0']
    %12 = vsyncpa [#allocation5], 0
    %13 = vsyncpa [#allocation8], 0
    %14 = vsyncpa [#allocation6], 0
    %s15 = scalar_lea.sflag [#allocation6], 1
    %16 = vsyncpa %s15, 0
    loop: start=0, step=1, limit=4
    $region2: #{tpu_custom_call.1} parent=1 // loop_pre_header
      _
    $region3: #{tpu_custom_call.1} parent=1 // loop_header
      %s18 = sphi 0, %s22
      %p19 = scmp.ge.s32.totalorder %s18, 4
      %s25 = sphi 0, %s37
      %s26 = sphi 0, %s33
      %s27 = sphi 0, %s25
      %s28 = sphi 0, %s26
      %s29 = sphi 0, %s27
      %s30 = sphi 0, %s28
      %s38 = sphi 0, %s38
      %s40 = sphi 0, %s38
      %s41 = sphi 0, %s40
      %s55 = sphi 0, %s41
      %s61 = sphi 0, %s63
      %s64 = sphi 0, %s61
      %s65 = sphi 0, %s64
      %s81 = sphi 0, %s65
      %s89 = sphi 0, %s91
      %s92 = sphi 0, %s89
      %s93 = sphi 0, %s92
      %s109 = sphi 0, %s93
    $region4: #{tpu_custom_call.1} parent=1 // loop_header_branch
      %21 = sbr.rel (%p19) target = $region8
    $region5: #{tpu_custom_call.1} parent=1 // loop_body
      %s23 = ssub.s32 %s18, 1
      %s24 = ssub.s32 %s18, 2
      %s31 = sadd.s32 1, %s26
      %p32 = scmp.ge.s32.totalorder %s31, 2
      %s33 = scalar_select %p32, 0, %s31
      %s34 = sadd.s32 1, %s25
      %s35 = scalar_select %p32, %s34, %s25
      %p36 = scmp.ge.s32.totalorder %s35, 1
      %s37 = scalar_select %p36, 0, %s35
      %s39 = sadd.s32 %s38, 1
      %p42 = scmp.eq.s32.totalorder %s18, 1
      %p43 = scmp.ne.s32.totalorder %s38, %s40
      %p44 = scmp.eq.s32.totalorder %s18, 0
      %p45 = por %p43, %p44
      %p46 = scmp.ne.s32.totalorder %s38, %s40
      %p47 = scmp.eq.s32.totalorder %s23, 1
      %p48 = por %p46, %p47
      %p49 = scmp.ne.s32.totalorder %s40, %s41
      %p50 = scmp.eq.s32.totalorder %s23, 0
      %p51 = por %p49, %p50
      %p52 = scmp.ne.s32.totalorder %s40, %s41
      %p53 = scmp.eq.s32.totalorder %s24, 1
      %p54 = por %p52, %p53
      %p56 = scmp.ne.s32.totalorder %s41, %s55
      %p57 = scmp.eq.s32.totalorder %s24, 0
      %p58 = por %p56, %p57
      %s59 = ssub.s32 %s25, %s37
      %p60 = scmp.eq.s32.totalorder %s59, 0
      %s62 = sadd.s32 %s61, 1
      %s63 = scalar_select %p60, %s61, %s62
      %p66 = pneg %p60
      %p67 = scmp.eq.s32.totalorder %s18, 1
      %p68 = por %p66, %p67
      %p69 = scmp.ne.s32.totalorder %s61, %s64
      %p70 = scmp.eq.s32.totalorder %s18, 0
      %p71 = por %p69, %p70
      %p72 = scmp.ne.s32.totalorder %s61, %s64
      %p73 = scmp.eq.s32.totalorder %s23, 1
      %p74 = por %p72, %p73
      %p75 = scmp.ne.s32.totalorder %s64, %s65
      %p76 = scmp.eq.s32.totalorder %s23, 0
      %p77 = por %p75, %p76
      %p78 = scmp.ne.s32.totalorder %s64, %s65
      %p79 = scmp.eq.s32.totalorder %s24, 1
      %p80 = por %p78, %p79
      %p82 = scmp.ne.s32.totalorder %s65, %s81
      %p83 = scmp.eq.s32.totalorder %s24, 0
      %p84 = por %p82, %p83
      %s85 = ssub.s32 %s26, %s33
      %s86 = ssub.s32 %s25, %s37
      %s87 = sor.u32 %s85, %s86
      %p88 = scmp.eq.s32.totalorder %s87, 0
      %s90 = sadd.s32 %s89, 1
      %s91 = scalar_select %p88, %s89, %s90
      %p94 = pneg %p88
      %p95 = scmp.eq.s32.totalorder %s18, 1
      %p96 = por %p94, %p95
      %p97 = scmp.ne.s32.totalorder %s89, %s92
      %p98 = scmp.eq.s32.totalorder %s18, 0
      %p99 = por %p97, %p98
      %p100 = scmp.ne.s32.totalorder %s89, %s92
      %p101 = scmp.eq.s32.totalorder %s23, 1
      %p102 = por %p100, %p101
      %p103 = scmp.ne.s32.totalorder %s92, %s93
      %p104 = scmp.eq.s32.totalorder %s23, 0
      %p105 = por %p103, %p104
      %p106 = scmp.ne.s32.totalorder %s92, %s93
      %p107 = scmp.eq.s32.totalorder %s24, 1
      %p108 = por %p106, %p107
      %p110 = scmp.ne.s32.totalorder %s93, %s109
      %p111 = scmp.eq.s32.totalorder %s24, 0
      %p112 = por %p110, %p111
      %p113 = scmp.le.s32.totalorder 1, %s18
      %p114 = scmp.lt.s32.totalorder %s18, 3
      %p115 = pnand %p113, %p114
      %p116 = pneg %p115
      // Predicated region
      $region9: #{tpu_custom_call.1} parent=5 // pred_check
        _
      $region10: #{tpu_custom_call.1} parent=5 // pred_check_branch
        %118 = sbr.rel (%p115) target = $region12
      $region11: #{tpu_custom_call.1} parent=5 // pred_region
        %s119 = ssub.s32 %s18, 1
        // Predicated region
        $region13: #{tpu_custom_call.1} parent=11 // pred_check
          %p120 = pneg %p51
        $region14: #{tpu_custom_call.1} parent=11 // pred_check_branch
          %122 = sbr.rel (%p120) target = $region16
        $region15: #{tpu_custom_call.1} parent=11 // pred_region
          %s124 = ssub.s32 1024, 1024
          %125 = vsyncadd [#allocation5], %s124
          %s126 = sshll.u32 [#allocation4], 4
          %s127 = int_to_ptr.vmem [resolvable:$true] %s126
          %132 = dma.hbm_to_vmem [thread:$0]  %s1, 1024, %s127, [#allocation5], 128, 128, 8
        $region16: #{tpu_custom_call.1} parent=11 // pred_fallthru
          _
        // Predicated region
        $region17: #{tpu_custom_call.1} parent=11 // pred_check
          %p133 = pneg %p77
        $region18: #{tpu_custom_call.1} parent=11 // pred_check_branch
          %135 = sbr.rel (%p133) target = $region20
        $region19: #{tpu_custom_call.1} parent=11 // pred_region
          %s136 = smul.u32 2, %s27
          %s138 = ssub.s32 256, 256
          %139 = vsyncadd [#allocation8], %s138
          %s140 = smul.addr %s136, 128
          %s141 = scalar_lea.hbm %s2, %s140
          %s142 = sshll.u32 [#allocation7], 4
          %s143 = int_to_ptr.vmem [resolvable:$true] %s142
          %148 = dma.hbm_to_vmem [thread:$0]  %s141, 256, %s143, [#allocation8], 128, 128, 8
        $region20: #{tpu_custom_call.1} parent=11 // pred_fallthru
          _
      $region12: #{tpu_custom_call.1} parent=5 // pred_fallthru
        _
      %p149 = scmp.lt.s32.totalorder %s18, 2
      // Predicated region
      $region21: #{tpu_custom_call.1} parent=5 // pred_check
        %p150 = pneg %p149
      $region22: #{tpu_custom_call.1} parent=5 // pred_check_branch
        %152 = sbr.rel (%p150) target = $region24
      $region23: #{tpu_custom_call.1} parent=5 // pred_region
        _
      $region24: #{tpu_custom_call.1} parent=5 // pred_fallthru
        _
      %p153 = scmp.le.s32.totalorder 1, %s18
      %p154 = scmp.lt.s32.totalorder %s18, 3
      %p155 = pnand %p153, %p154
      %p156 = pneg %p155
      // Predicated region
      $region25: #{tpu_custom_call.1} parent=5 // pred_check
        _
      $region26: #{tpu_custom_call.1} parent=5 // pred_check_branch
        %158 = sbr.rel (%p155) target = $region28
      $region27: #{tpu_custom_call.1} parent=5 // pred_region
        %s159 = ssub.s32 %s18, 1
        // Predicated region
        $region29: #{tpu_custom_call.1} parent=27 // pred_check
          %p160 = pneg %p51
        $region30: #{tpu_custom_call.1} parent=27 // pred_check_branch
          %162 = sbr.rel (%p160) target = $region32
        $region31: #{tpu_custom_call.1} parent=27 // pred_region
          %163 = dma.done [#allocation5], 1024
        $region32: #{tpu_custom_call.1} parent=27 // pred_fallthru
          _
        // Predicated region
        $region33: #{tpu_custom_call.1} parent=27 // pred_check
          %p164 = pneg %p77
        $region34: #{tpu_custom_call.1} parent=27 // pred_check_branch
          %166 = sbr.rel (%p164) target = $region36
        $region35: #{tpu_custom_call.1} parent=27 // pred_region
          %167 = dma.done [#allocation8], 256
        $region36: #{tpu_custom_call.1} parent=27 // pred_fallthru
          _
        %p168 = pneg %p51
        %p169 = pneg %p48
        %p170 = pneg %p77
        %p171 = pneg %p74
        %p172 = pneg %p105
        %p173 = pneg %p102
        %s174 = sand.u32 %s92, 1
        %s175 = scalar_lea.sflag [#allocation6], %s174
        %s176 = sand.u32 %s92, 1
        %s177 = smul.addr %s176, 16
        %s178 = scalar_lea.vmem [#allocation9], %s177
        %s179 = smul.u32 2, %s27
        %s180 = smul.u32 2, %s27
        %s181 = smul.u32 %s28, 16
        %s182 = smul.u32 %s27, 16
        %s183 = sadd.s32 %s181, %s182
        %s184 = sld [smem:[#allocation3 + %s183]]
        %p185 = scmp.gt.s32.totalorder %s184, 0
        %s186 = scalar_select %p185, %s184, 0
        %p187 = scmp.lt.s32.totalorder %s186, 63
        %s188 = scalar_select %p187, %s186, 63
        %s189 = scalar_lea.vmem [#allocation4], %s188
        %v190 = vld [vmem:[%s189] sm:$0x1]
        %191 = vst [vmem:[%s178] sm:$0x1] %v190
        %s192 = sadd.s32 %s183, 1
        %s193 = sld [smem:[#allocation3 + %s192]]
        %p194 = scmp.gt.s32.totalorder %s193, 0
        %s195 = scalar_select %p194, %s193, 0
        %p196 = scmp.lt.s32.totalorder %s195, 63
        %s197 = scalar_select %p196, %s195, 63
        %s198 = scalar_lea.vmem [#allocation4], %s197
        %v199 = vld [vmem:[%s198] sm:$0x1]
        %200 = vst [vmem:[%s178 + $0x1] sm:$0x1] %v199
        %s201 = sadd.s32 %s183, 2
        %s202 = sld [smem:[#allocation3 + %s201]]
        %p203 = scmp.gt.s32.totalorder %s202, 0
        %s204 = scalar_select %p203, %s202, 0
        %p205 = scmp.lt.s32.totalorder %s204, 63
        %s206 = scalar_select %p205, %s204, 63
        %s207 = scalar_lea.vmem [#allocation4], %s206
        %v208 = vld [vmem:[%s207] sm:$0x1]
        %209 = vst [vmem:[%s178 + $0x2] sm:$0x1] %v208
        %s210 = sadd.s32 %s183, 3
        %s211 = sld [smem:[#allocation3 + %s210]]
        %p212 = scmp.gt.s32.totalorder %s211, 0
        %s213 = scalar_select %p212, %s211, 0
        %p214 = scmp.lt.s32.totalorder %s213, 63
        %s215 = scalar_select %p214, %s213, 63
        %s216 = scalar_lea.vmem [#allocation4], %s215
        %v217 = vld [vmem:[%s216] sm:$0x1]
        %218 = vst [vmem:[%s178 + $0x3] sm:$0x1] %v217
        %s219 = sadd.s32 %s183, 4
        %s220 = sld [smem:[#allocation3 + %s219]]
        %p221 = scmp.gt.s32.totalorder %s220, 0
        %s222 = scalar_select %p221, %s220, 0
        %p223 = scmp.lt.s32.totalorder %s222, 63
        %s224 = scalar_select %p223, %s222, 63
        %s225 = scalar_lea.vmem [#allocation4], %s224
        %v226 = vld [vmem:[%s225] sm:$0x1]
        %227 = vst [vmem:[%s178 + $0x4] sm:$0x1] %v226
        %s228 = sadd.s32 %s183, 5
        %s229 = sld [smem:[#allocation3 + %s228]]
        %p230 = scmp.gt.s32.totalorder %s229, 0
        %s231 = scalar_select %p230, %s229, 0
        %p232 = scmp.lt.s32.totalorder %s231, 63
        %s233 = scalar_select %p232, %s231, 63
        %s234 = scalar_lea.vmem [#allocation4], %s233
        %v235 = vld [vmem:[%s234] sm:$0x1]
        %236 = vst [vmem:[%s178 + $0x5] sm:$0x1] %v235
        %s237 = sadd.s32 %s183, 6
        %s238 = sld [smem:[#allocation3 + %s237]]
        %p239 = scmp.gt.s32.totalorder %s238, 0
        %s240 = scalar_select %p239, %s238, 0
        %p241 = scmp.lt.s32.totalorder %s240, 63
        %s242 = scalar_select %p241, %s240, 63
        %s243 = scalar_lea.vmem [#allocation4], %s242
        %v244 = vld [vmem:[%s243] sm:$0x1]
        %245 = vst [vmem:[%s178 + $0x6] sm:$0x1] %v244
        %s246 = sadd.s32 %s183, 7
        %s247 = sld [smem:[#allocation3 + %s246]]
        %p248 = scmp.gt.s32.totalorder %s247, 0
        %s249 = scalar_select %p248, %s247, 0
        %p250 = scmp.lt.s32.totalorder %s249, 63
        %s251 = scalar_select %p250, %s249, 63
        %s252 = scalar_lea.vmem [#allocation4], %s251
        %v253 = vld [vmem:[%s252] sm:$0x1]
        %254 = vst [vmem:[%s178 + $0x7] sm:$0x1] %v253
        %s255 = sadd.s32 %s183, 8
        %s256 = sld [smem:[#allocation3 + %s255]]
        %p257 = scmp.gt.s32.totalorder %s256, 0
        %s258 = scalar_select %p257, %s256, 0
        %p259 = scmp.lt.s32.totalorder %s258, 63
        %s260 = scalar_select %p259, %s258, 63
        %s261 = scalar_lea.vmem [#allocation4], %s260
        %v262 = vld [vmem:[%s261] sm:$0x1]
        %263 = vst [vmem:[%s178 + $0x8] sm:$0x1] %v262
        %s264 = sadd.s32 %s183, 9
        %s265 = sld [smem:[#allocation3 + %s264]]
        %p266 = scmp.gt.s32.totalorder %s265, 0
        %s267 = scalar_select %p266, %s265, 0
        %p268 = scmp.lt.s32.totalorder %s267, 63
        %s269 = scalar_select %p268, %s267, 63
        %s270 = scalar_lea.vmem [#allocation4], %s269
        %v271 = vld [vmem:[%s270] sm:$0x1]
        %272 = vst [vmem:[%s178 + $0x9] sm:$0x1] %v271
        %s273 = sadd.s32 %s183, 10
        %s274 = sld [smem:[#allocation3 + %s273]]
        %p275 = scmp.gt.s32.totalorder %s274, 0
        %s276 = scalar_select %p275, %s274, 0
        %p277 = scmp.lt.s32.totalorder %s276, 63
        %s278 = scalar_select %p277, %s276, 63
        %s279 = scalar_lea.vmem [#allocation4], %s278
        %v280 = vld [vmem:[%s279] sm:$0x1]
        %281 = vst [vmem:[%s178 + $0xa] sm:$0x1] %v280
        %s282 = sadd.s32 %s183, 11
        %s283 = sld [smem:[#allocation3 + %s282]]
        %p284 = scmp.gt.s32.totalorder %s283, 0
        %s285 = scalar_select %p284, %s283, 0
        %p286 = scmp.lt.s32.totalorder %s285, 63
        %s287 = scalar_select %p286, %s285, 63
        %s288 = scalar_lea.vmem [#allocation4], %s287
        %v289 = vld [vmem:[%s288] sm:$0x1]
        %290 = vst [vmem:[%s178 + $0xb] sm:$0x1] %v289
        %s291 = sadd.s32 %s183, 12
        %s292 = sld [smem:[#allocation3 + %s291]]
        %p293 = scmp.gt.s32.totalorder %s292, 0
        %s294 = scalar_select %p293, %s292, 0
        %p295 = scmp.lt.s32.totalorder %s294, 63
        %s296 = scalar_select %p295, %s294, 63
        %s297 = scalar_lea.vmem [#allocation4], %s296
        %v298 = vld [vmem:[%s297] sm:$0x1]
        %299 = vst [vmem:[%s178 + $0xc] sm:$0x1] %v298
        %s300 = sadd.s32 %s183, 13
        %s301 = sld [smem:[#allocation3 + %s300]]
        %p302 = scmp.gt.s32.totalorder %s301, 0
        %s303 = scalar_select %p302, %s301, 0
        %p304 = scmp.lt.s32.totalorder %s303, 63
        %s305 = scalar_select %p304, %s303, 63
        %s306 = scalar_lea.vmem [#allocation4], %s305
        %v307 = vld [vmem:[%s306] sm:$0x1]
        %308 = vst [vmem:[%s178 + $0xd] sm:$0x1] %v307
        %s309 = sadd.s32 %s183, 14
        %s310 = sld [smem:[#allocation3 + %s309]]
        %p311 = scmp.gt.s32.totalorder %s310, 0
        %s312 = scalar_select %p311, %s310, 0
        %p313 = scmp.lt.s32.totalorder %s312, 63
        %s314 = scalar_select %p313, %s312, 63
        %s315 = scalar_lea.vmem [#allocation4], %s314
        %v316 = vld [vmem:[%s315] sm:$0x1]
        %317 = vst [vmem:[%s178 + $0xe] sm:$0x1] %v316
        %s318 = sadd.s32 %s183, 15
        %s319 = sld [smem:[#allocation3 + %s318]]
        %p320 = scmp.gt.s32.totalorder %s319, 0
        %s321 = scalar_select %p320, %s319, 0
        %p322 = scmp.lt.s32.totalorder %s321, 63
        %s323 = scalar_select %p322, %s321, 63
        %s324 = scalar_lea.vmem [#allocation4], %s323
        %v325 = vld [vmem:[%s324] sm:$0x1]
        %326 = vst [vmem:[%s178 + $0xf] sm:$0x1] %v325
        %v327 = vld [vmem:[%s178] sm:$0xff]
        %v328 = vld [vmem:[%s178 + $0x8] sm:$0xff]
        %v329 = vmul.f32 %v327, 11.313708
        %v330 = vmul.f32 %v328, 11.313708
        %v331 = vld [vmem:[#allocation7] sm:$0xff]
        %v332 = vld [vmem:[#allocation7 + $0x8] sm:$0xff]
        %v333 = vadd.f32 %v329, %v331
        %v334 = vadd.f32 %v330, %v332
        %335 = vst [vmem:[%s178] sm:$0xff] %v333
        %336 = vst [vmem:[%s178 + $0x8] sm:$0xff] %v334
        %s337 = sand.u32 %s92, 1
        %s338 = scalar_lea.sflag [#allocation6], %s337
        %s339 = sand.u32 %s92, 1
        %s340 = smul.addr %s339, 16
        %s341 = scalar_lea.vmem [#allocation9], %s340
        // Predicated region
        $region37: #{tpu_custom_call.1} parent=27 // pred_check
          %p342 = pneg %p102
        $region38: #{tpu_custom_call.1} parent=27 // pred_check_branch
          %344 = sbr.rel (%p342) target = $region40
        $region39: #{tpu_custom_call.1} parent=27 // pred_region
          %s345 = smul.u32 2, %s27
          %s347 = ssub.s32 256, 256
          %348 = vsyncadd %s338, %s347
          %s349 = smul.addr %s28, 2
          %s350 = sadd.s32 %s345, %s349
          %s351 = smul.addr %s350, 128
          %s352 = scalar_lea.hbm %s3, %s351
          %s353 = sshll.u32 %s341, 4
          %s354 = int_to_ptr.vmem [resolvable:$true] %s353
          %359 = dma.vmem_to_hbm [thread:$0]  %s354, 256, %s352, %s338, 128, 128, 8
        $region40: #{tpu_custom_call.1} parent=27 // pred_fallthru
          _
      $region28: #{tpu_custom_call.1} parent=5 // pred_fallthru
        _
      %p360 = scmp.le.s32.totalorder 2, %s18
      // Predicated region
      $region41: #{tpu_custom_call.1} parent=5 // pred_check
        %p361 = pneg %p360
      $region42: #{tpu_custom_call.1} parent=5 // pred_check_branch
        %363 = sbr.rel (%p361) target = $region44
      $region43: #{tpu_custom_call.1} parent=5 // pred_region
        %s364 = ssub.s32 %s18, 2
        // Predicated region
        $region45: #{tpu_custom_call.1} parent=43 // pred_check
          %p365 = pneg %p108
        $region46: #{tpu_custom_call.1} parent=43 // pred_check_branch
          %367 = sbr.rel (%p365) target = $region48
        $region47: #{tpu_custom_call.1} parent=43 // pred_region
          %s368 = sand.u32 %s93, 1
          %s369 = scalar_lea.sflag [#allocation6], %s368
          %s370 = sand.u32 %s93, 1
          %s371 = smul.addr %s370, 16
          %s372 = scalar_lea.vmem [#allocation9], %s371
          %373 = dma.done %s369, 256
        $region48: #{tpu_custom_call.1} parent=43 // pred_fallthru
          _
      $region44: #{tpu_custom_call.1} parent=5 // pred_fallthru
        _
    $region6: #{tpu_custom_call.1} parent=1 // loop_footer
      %s22 = sadd.s32 1, %s18
    $region7: #{tpu_custom_call.1} parent=1 // loop_footer_branch
      %17 = sbr.rel target = $region3
    $region8: #{tpu_custom_call.1} parent=1 // loop_exit
      _
    %374 = vsyncpa [#allocation5], 1
    %s375 = scalar_lea.sflag [#allocation5], 1
    %376 = vsyncpa %s375, 1
    %377 = vsyncpa [#allocation8], 1
    %378 = vsyncpa [#allocation6], 1
    %s379 = scalar_lea.sflag [#allocation6], 1
    %380 = vsyncpa %s379, 1

</llo_original>
